<compile_context>
chip_gen: v7x
topology: tpu7x:2x2x1
jax: 0.10.0
libtpu: 0.0.40
codegen_flags: <defaults>
</compile_context>

<pallas_src>
import functools

import jax
import jax.numpy as jnp
from jax.experimental import pallas as pl
from jax.experimental.pallas import tpu as pltpu


def _round_up(x, m):
    return ((x + m - 1) // m) * m


# ---------------------------------------------------------------------------
# Stage 1: branch FNN   y_func = tanh(x @ W1 + b1) @ W2 + b2      (rows tiled)
# ---------------------------------------------------------------------------
def _fnn_rows_kernel(x_ref, w1_ref, b1_ref, w2_ref, b2_ref, out_ref, *, out_tanh):
    f32 = jnp.float32
    h = jnp.tanh(
        jnp.dot(x_ref[...], w1_ref[...], preferred_element_type=f32) + b1_ref[...]
    )
    y = jnp.dot(h, w2_ref[...], preferred_element_type=f32) + b2_ref[...]
    if out_tanh:
        y = jnp.tanh(y)
    out_ref[...] = y.astype(out_ref.dtype)


def _branch_fnn(x_func, w1, b1, w2, b2, *, out_dtype, row_tile=1024):
    N1, d_in = x_func.shape
    P = w2.shape[1]
    tb = _round_up(min(row_tile, _round_up(N1, 8)), 8)
    grid = (pl.cdiv(N1, tb),)

    def full(a):
        return pl.BlockSpec(a.shape, lambda i: (0,) * a.ndim)

    return pl.pallas_call(
        functools.partial(_fnn_rows_kernel, out_tanh=False),
        out_shape=jax.ShapeDtypeStruct((N1, P), out_dtype),
        grid=grid,
        in_specs=[pl.BlockSpec((tb, d_in), lambda i: (i, 0)),
                  full(w1), full(b1), full(w2), full(b2)],
        out_specs=pl.BlockSpec((tb, P), lambda i: (i, 0)),
        compiler_params=pltpu.CompilerParams(
            dimension_semantics=("parallel",)),
    )(x_func, w1, b1, w2, b2)


# ---------------------------------------------------------------------------
# Stage 2: trunk FNN in transposed layout
#   y_locT = tanh( W2^T @ tanh(W1^T @ x^T + b1^T) + b2^T )        (columns tiled)
# ---------------------------------------------------------------------------
def _fnn_cols_kernel(xT_ref, w1T_ref, b1T_ref, w2T_ref, b2T_ref, out_ref, *, out_tanh):
    f32 = jnp.float32
    h = jnp.tanh(
        jnp.dot(w1T_ref[...], xT_ref[...], preferred_element_type=f32) + b1T_ref[...]
    )
    y = jnp.dot(w2T_ref[...], h, preferred_element_type=f32) + b2T_ref[...]
    if out_tanh:
        y = jnp.tanh(y)
    out_ref[...] = y.astype(out_ref.dtype)


def _trunk_fnn_transposed(x_loc, w1, b1, w2, b2, *, out_dtype, col_tile=2048):
    N2, d_in = x_loc.shape
    P = w2.shape[1]
    # Pre-transpose tiny arrays once in XLA so the kernel is transpose-free.
    x_locT = jnp.asarray(x_loc).T      # (d_in, N2)
    w1T, b1T = w1.T, b1.T              # (H, d_in), (H, 1)
    w2T, b2T = w2.T, b2.T              # (P, H),  (P, 1)

    tt = _round_up(min(col_tile, _round_up(N2, 128)), 128)
    grid = (pl.cdiv(N2, tt),)

    def full(a):
        return pl.BlockSpec(a.shape, lambda j: (0,) * a.ndim)

    return pl.pallas_call(
        functools.partial(_fnn_cols_kernel, out_tanh=True),
        out_shape=jax.ShapeDtypeStruct((P, N2), out_dtype),
        grid=grid,
        in_specs=[pl.BlockSpec((d_in, tt), lambda j: (0, j)),
                  full(w1T), full(b1T), full(w2T), full(b2T)],
        out_specs=pl.BlockSpec((P, tt), lambda j: (0, j)),
        compiler_params=pltpu.CompilerParams(
            dimension_semantics=("parallel",)),
    )(x_locT, w1T, b1T, w2T, b2T)


# ---------------------------------------------------------------------------
# Stage 3: merge  out[i,j] tile = y_func_tile @ y_locT_tile + b     (2D grid)
# ---------------------------------------------------------------------------
def _merge_kernel(yf_ref, ylT_ref, b_ref, out_ref):
    y = jnp.dot(yf_ref[...], ylT_ref[...], preferred_element_type=jnp.float32)
    out_ref[...] = (y + b_ref[0]).astype(out_ref.dtype)


def deeponet_cartesian_prod(x_func, x_loc, params, *, tm=512, tn=2048,
                            use_bf16_matmul=True, out_dtype=jnp.float32):
    """Fused DeepONetCartesianProd forward. Returns (N1, N2) array of `out_dtype`."""
    N1 = x_func.shape[0]
    N2 = x_loc.shape[0]
    P = params["wb2"].shape[1]

    # Intermediates stored bf16 when requested: producers cast once, merge loop
    # loads bf16 directly (no per-iteration VPU casts), f32 accumulation in MXU.
    inter_dtype = jnp.bfloat16 if use_bf16_matmul else jnp.float32

    y_func = _branch_fnn(
        x_func, params["wb1"], params["bb1"], params["wb2"], params["bb2"],
        out_dtype=inter_dtype)
    y_locT = _trunk_fnn_transposed(
        x_loc, params["wt1"], params["bt1"], params["wt2"], params["bt2"],
        out_dtype=inter_dtype, col_tile=tn)

    # Fixed, aligned tiles + cdiv grid; Pallas masks the ragged last blocks.
    tm = _round_up(min(tm, _round_up(N1, 8)), 8)       # sublane-aligned row tile
    tn = _round_up(min(tn, _round_up(N2, 128)), 128)   # lane-dense output tile
    gi, gj = pl.cdiv(N1, tm), pl.cdiv(N2, tn)

    out_bytes = jnp.dtype(out_dtype).itemsize
    in_bytes = jnp.dtype(inter_dtype).itemsize
    # Double-buffered working set; cap the limit at 48 MiB (safe on v7x's 64 MiB
    # physical VMEM, trivially fits v5e/v6e).
    vmem_need = 2 * (tm * tn * out_bytes + tm * P * in_bytes + P * tn * in_bytes)
    vmem_limit = int(min(max(2 * vmem_need + (1 << 20), 32 << 20), 48 << 20))

    flops = 2 * N1 * N2 * P
    bytes_accessed = (N1 * N2 * out_bytes          # output writeback (dominant)
                      + gj * N1 * P * in_bytes     # y_func re-fetched per column of tiles
                      + gi * N2 * P * in_bytes     # y_locT re-fetched per row of tiles
                      + 4)

    return pl.pallas_call(
        _merge_kernel,
        out_shape=jax.ShapeDtypeStruct((N1, N2), out_dtype),
        grid=(gi, gj),
        in_specs=[
            pl.BlockSpec((tm, P), lambda i, j: (i, 0)),            # y_func, blocked on i
            pl.BlockSpec((P, tn), lambda i, j: (0, j)),            # y_loc^T, blocked on j
            pl.BlockSpec(memory_space=pltpu.MemorySpace.SMEM),     # scalar bias b
        ],
        out_specs=pl.BlockSpec((tm, tn), lambda i, j: (i, j)),
        compiler_params=pltpu.CompilerParams(
            # Branch/trunk are precomputed, so there is no cross-tile state:
            # both axes are independent -> both "parallel" (v7x megacore can
            # shard either axis).
            dimension_semantics=("parallel", "parallel"),
            vmem_limit_bytes=vmem_limit,
        ),
        cost_estimate=pl.CostEstimate(
            flops=flops, transcendentals=0, bytes_accessed=bytes_accessed),
    )(y_func, y_locT, params["b"])


# ---------------------------------------------------------------------------
# Pure-JAX reference and parameter construction
# ---------------------------------------------------------------------------
def deeponet_reference(x_func, x_loc, p):
    """Pure-JAX reference of DeepONetCartesianProd (single-output) forward."""
    y_func = jnp.tanh(x_func @ p["wb1"] + p["bb1"]) @ p["wb2"] + p["bb2"]
    y_loc = jnp.tanh(jnp.tanh(x_loc @ p["wt1"] + p["bt1"]) @ p["wt2"] + p["bt2"])
    return jnp.einsum("bp,np->bn", y_func, y_loc) + p["b"][0]


def make_params(key, d_branch, d_trunk, hidden, p):
    """Glorot-normal weights. Biases get small random values here (DeepXDE inits
    them to zero) so the bias path is actually exercised by the test."""
    ks = jax.random.split(key, 9)

    def glorot(k, fan_in, fan_out):
        std = jnp.sqrt(2.0 / (fan_in + fan_out))
        return jax.random.normal(k, (fan_in, fan_out), jnp.float32) * std

    def small(k, shape):
        return jax.random.normal(k, shape, jnp.float32) * 0.1

    return {
        "wb1": glorot(ks[0], d_branch, hidden), "bb1": small(ks[1], (1, hidden)),
        "wb2": glorot(ks[2], hidden, p),        "bb2": small(ks[3], (1, p)),
        "wt1": glorot(ks[4], d_trunk, hidden),  "bt1": small(ks[5], (1, hidden)),
        "wt2": glorot(ks[6], hidden, p),        "bt2": small(ks[7], (1, p)),
        "b":   small(ks[8], (1,)),              # scalar bias self.b[0]
    }


if __name__ == "__main__":
    # DeepONetCartesianProd(layer_sizes_branch=[16, 32, 32],
    #                       layer_sizes_trunk=[8, 32, 32],
    #                       activation="tanh", kernel_initializer="Glorot normal")
    N1, N2 = 16, 256            # branch batch size, number of trunk locations
    D_BRANCH, D_TRUNK = 16, 8
    HIDDEN, P = 32, 32

    key = jax.random.PRNGKey(0)
    k1, k2, kp = jax.random.split(key, 3)
    x_func = jax.random.normal(k1, (N1, D_BRANCH), jnp.float32)
    x_loc = jax.random.normal(k2, (N2, D_TRUNK), jnp.float32)
    params = make_params(kp, D_BRANCH, D_TRUNK, HIDDEN, P)

    ref = deeponet_reference(x_func, x_loc, params)

    # 1) f32 everywhere with small tiles -> exercises a 2x2 merge grid.
    out = jax.block_until_ready(deeponet_cartesian_prod(
        x_func, x_loc, params, tm=8, tn=128, use_bf16_matmul=False))
    assert out.shape == (N1, N2)
    assert jnp.allclose(out, ref, atol=1e-4, rtol=1e-4), \
        "Pallas f32 (small tiles) mismatch vs reference"

    # 2) Default large tiles (clamped to the problem size), f32.
    out = jax.block_until_ready(deeponet_cartesian_prod(
        x_func, x_loc, params, use_bf16_matmul=False))
    assert jnp.allclose(out, ref, atol=1e-4, rtol=1e-4), \
        "Pallas f32 (default tiles) mismatch vs reference"

    # 3) Performance path: bf16 intermediates + bf16 output, f32 accumulation.
    out_bf = jax.block_until_ready(deeponet_cartesian_prod(
        x_func, x_loc, params, use_bf16_matmul=True, out_dtype=jnp.bfloat16))
    assert jnp.allclose(out_bf.astype(jnp.float32), ref, atol=5e-2, rtol=5e-2), \
        "Pallas bf16 path mismatch vs reference"

    # 4) Ragged shapes -> cdiv grid with masked last blocks on both axes.
    N1r, N2r = 40, 600
    kr1, kr2 = jax.random.split(jax.random.PRNGKey(1))
    xfr = jax.random.normal(kr1, (N1r, D_BRANCH), jnp.float32)
    xlr = jax.random.normal(kr2, (N2r, D_TRUNK), jnp.float32)
    ref_r = deeponet_reference(xfr, xlr, params)
    out_r = jax.block_until_ready(deeponet_cartesian_prod(
        xfr, xlr, params, tm=16, tn=256, use_bf16_matmul=False))
    assert out_r.shape == (N1r, N2r)
    assert jnp.allclose(out_r, ref_r, atol=1e-4, rtol=1e-4), \
        "Pallas ragged-shape output mismatch vs reference"

    print("KERNEL_OK")
</pallas_src>

<mosaic_0001>
module attributes {stable_mosaic.version = 11 : i64} {
  func.func @_fnn_rows_kernel(%arg0: i32, %arg1: memref<16x16xf32, #tpu.memory_space<vmem>>, %arg2: memref<16x32xf32, #tpu.memory_space<vmem>>, %arg3: memref<1x32xf32, #tpu.memory_space<vmem>>, %arg4: memref<32x32xf32, #tpu.memory_space<vmem>>, %arg5: memref<1x32xf32, #tpu.memory_space<vmem>>, %arg6: memref<16x32xf32, #tpu.memory_space<vmem>>) attributes {dimension_semantics = [#tpu.dimension_semantics<parallel>], iteration_bounds = array<i64: 1>, scalar_prefetch = 0 : i64, scratch_operands = 0 : i64, tpu.core_type = #tpu.core_type<tc>, window_params = [{transform_indices = @transform_0, window_bounds = array<i64: 16, 16>}, {pipeline_mode = #tpu.pipeline_mode<synchronous>, transform_indices = @transform_1, window_bounds = array<i64: 16, 32>}, {pipeline_mode = #tpu.pipeline_mode<synchronous>, transform_indices = @transform_2, window_bounds = array<i64: 1, 32>}, {pipeline_mode = #tpu.pipeline_mode<synchronous>, transform_indices = @transform_3, window_bounds = array<i64: 32, 32>}, {pipeline_mode = #tpu.pipeline_mode<synchronous>, transform_indices = @transform_4, window_bounds = array<i64: 1, 32>}, {transform_indices = @transform_5, window_bounds = array<i64: 16, 32>}]} {
    %c0 = arith.constant 0 : index
    %c0_0 = arith.constant 0 : index
    %0 = vector.load %arg1[%c0, %c0_0] : memref<16x16xf32, #tpu.memory_space<vmem>>, vector<16x16xf32>
    %c0_1 = arith.constant 0 : index
    %c0_2 = arith.constant 0 : index
    %1 = vector.load %arg2[%c0_1, %c0_2] : memref<16x32xf32, #tpu.memory_space<vmem>>, vector<16x32xf32>
    %cst = arith.constant dense<0.000000e+00> : vector<16x32xf32>
    %2 = tpu.matmul %0, %1, %cst {dimension_numbers = #tpu.dot_dimension_numbers<[1], [0], [0], [1], [0, 0, 1, 1], [], []>} : vector<16x16xf32>, vector<16x32xf32>, vector<16x32xf32> -> vector<16x32xf32>
    %c0_3 = arith.constant 0 : index
    %c0_4 = arith.constant 0 : index
    %3 = vector.load %arg3[%c0_3, %c0_4] : memref<1x32xf32, #tpu.memory_space<vmem>>, vector<1x32xf32>
    %4 = vector.broadcast %3 : vector<1x32xf32> to vector<16x32xf32>
    %5 = arith.addf %2, %4 : vector<16x32xf32>
    %6 = math.tanh %5 : vector<16x32xf32>
    %c0_5 = arith.constant 0 : index
    %c0_6 = arith.constant 0 : index
    %7 = vector.load %arg4[%c0_5, %c0_6] : memref<32x32xf32, #tpu.memory_space<vmem>>, vector<32x32xf32>
    %cst_7 = arith.constant dense<0.000000e+00> : vector<16x32xf32>
    %8 = tpu.matmul %6, %7, %cst_7 {dimension_numbers = #tpu.dot_dimension_numbers<[1], [0], [0], [1], [0, 0, 1, 1], [], []>} : vector<16x32xf32>, vector<32x32xf32>, vector<16x32xf32> -> vector<16x32xf32>
    %c0_8 = arith.constant 0 : index
    %c0_9 = arith.constant 0 : index
    %9 = vector.load %arg5[%c0_8, %c0_9] : memref<1x32xf32, #tpu.memory_space<vmem>>, vector<1x32xf32>
    %10 = vector.broadcast %9 : vector<1x32xf32> to vector<16x32xf32>
    %11 = arith.addf %8, %10 : vector<16x32xf32>
    %c0_10 = arith.constant 0 : index
    %c0_11 = arith.constant 0 : index
    %12 = vector.load %arg6[%c0_10, %c0_11] : memref<16x32xf32, #tpu.memory_space<vmem>>, vector<16x32xf32>
    tpu.vector_store %arg6[%c0_10, %c0_11], %11 {strides = array<i32>} : memref<16x32xf32, #tpu.memory_space<vmem>>, vector<16x32xf32>,
    return
  }
  func.func @transform_0(%arg0: i32) -> (i32, i32) {
    %c0_i32 = arith.constant 0 : i32
    %c0_i32_0 = arith.constant 0 : i32
    return %arg0, %c0_i32 : i32, i32
  }
  func.func @transform_1(%arg0: i32) -> (i32, i32) {
    %c0_i32 = arith.constant 0 : i32
    %c0_i32_0 = arith.constant 0 : i32
    %c0_i32_1 = arith.constant 0 : i32
    return %c0_i32, %c0_i32_0 : i32, i32
  }
  func.func @transform_2(%arg0: i32) -> (i32, i32) {
    %c0_i32 = arith.constant 0 : i32
    %c0_i32_0 = arith.constant 0 : i32
    %c0_i32_1 = arith.constant 0 : i32
    return %c0_i32, %c0_i32_0 : i32, i32
  }
  func.func @transform_3(%arg0: i32) -> (i32, i32) {
    %c0_i32 = arith.constant 0 : i32
    %c0_i32_0 = arith.constant 0 : i32
    %c0_i32_1 = arith.constant 0 : i32
    return %c0_i32, %c0_i32_0 : i32, i32
  }
  func.func @transform_4(%arg0: i32) -> (i32, i32) {
    %c0_i32 = arith.constant 0 : i32
    %c0_i32_0 = arith.constant 0 : i32
    %c0_i32_1 = arith.constant 0 : i32
    return %c0_i32, %c0_i32_0 : i32, i32
  }
  func.func @transform_5(%arg0: i32) -> (i32, i32) {
    %c0_i32 = arith.constant 0 : i32
    %c0_i32_0 = arith.constant 0 : i32
    return %arg0, %c0_i32 : i32, i32
  }
}

</mosaic_0001>

<llo_original>
// kernel: tpu_custom_call.1
$region0: #{tpu_custom_call.1}
  #allocation0 [shape = 'u32[]', space=smem, size = 0x4, offset = 0x4, fixed_abs, tag = 'smem constant byte address 0x4 - core index']
  #allocation1 [shape = 'u32[144,128]{1,0:T(1,128)}', space=vmem, size = 0x12000, scoped, tag = 'internal scratch']
  %s0 = inlined_call_operand.hbm [shape: f32[16,16], index: 0, kind: input, shape index: {}]
  %s1 = inlined_call_operand.hbm [shape: f32[16,32], index: 1, kind: input, shape index: {}]
  %s2 = inlined_call_operand.vmem [shape: f32[1,32], index: 2, kind: input, shape index: {}]
  %s3 = inlined_call_operand.hbm [shape: f32[32,32], index: 3, kind: input, shape index: {}]
  %s4 = inlined_call_operand.vmem [shape: f32[1,32], index: 4, kind: input, shape index: {}]
  %s5 = inlined_call_operand.hbm [shape: f32[16,32], index: 5, kind: output, shape index: {}]
  %s6 = sld [smem:[#allocation0]]
  $region42: #{tpu_custom_call.1} parent=0
    _
  %s8 = ssub.s32 1, %s6
  %s9 = scalar_select 0, %s8, %s6
  $region1: #{tpu_custom_call.1} parent=0
    #allocation2 [shape = 'u8[8192]{0}', space=vmem, size = 0x2000, scoped, tag = 'input window, operand 0, single buffered']
    #allocation3 [shape = 's32[1]{0}', space=sflag, size = 0x4, scoped, tag = 'scoped memory for tpu_custom_call.1']
    #allocation4 [shape = 's32[1]{0}', space=sflag, size = 0x4, scoped, tag = 'scoped memory for tpu_custom_call.1']
    #allocation5 [shape = 'u8[8192]{0}', space=vmem, size = 0x2000, scoped, tag = 'input window, operand 1, single buffered']
    #allocation6 [shape = 's32[1]{0}', space=sflag, size = 0x4, scoped, tag = 'scoped memory for tpu_custom_call.1']
    #allocation7 [shape = 'u8[16384]{0}', space=vmem, size = 0x4000, scoped, tag = 'input window, operand 3, single buffered']
    #allocation8 [shape = 'u8[8192]{0}', space=vmem, size = 0x2000, scoped, tag = 'output window, operand 0, single buffered']
    %10 = vsyncpa [#allocation3], 0
    %11 = vsyncpa [#allocation6], 0
    %12 = vsyncpa [#allocation4], 0
    // Predicated region
    $region2: #{tpu_custom_call.1} parent=1 // pred_check
      _
    $region3: #{tpu_custom_call.1} parent=1 // pred_check_branch
      %14 = sbr.rel (0) target = $region5
    $region4: #{tpu_custom_call.1} parent=1 // pred_region
      %s16 = ssub.s32 256, 256
      %17 = vsyncadd [#allocation3], %s16
      %s18 = sshll.u32 [#allocation2], 4
      %s19 = int_to_ptr.vmem [resolvable:$true] %s18
      %24 = dma.hbm_to_vmem [thread:$0]  %s0, 256, %s19, [#allocation3], 128, 128, 8
    $region5: #{tpu_custom_call.1} parent=1 // pred_fallthru
      _
    // Predicated region
    $region6: #{tpu_custom_call.1} parent=1 // pred_check
      _
    $region7: #{tpu_custom_call.1} parent=1 // pred_check_branch
      %26 = sbr.rel (0) target = $region9
    $region8: #{tpu_custom_call.1} parent=1 // pred_region
      %s28 = ssub.s32 256, 256
      %29 = vsyncadd [#allocation6], %s28
      %s30 = sshll.u32 [#allocation5], 4
      %s31 = int_to_ptr.vmem [resolvable:$true] %s30
      %36 = dma.hbm_to_vmem [thread:$0]  %s1, 256, %s31, [#allocation6], 128, 128, 8
    $region9: #{tpu_custom_call.1} parent=1 // pred_fallthru
      _
    // Predicated region
    $region10: #{tpu_custom_call.1} parent=1 // pred_check
      _
    $region11: #{tpu_custom_call.1} parent=1 // pred_check_branch
      %38 = sbr.rel (0) target = $region13
    $region12: #{tpu_custom_call.1} parent=1 // pred_region
      _
    $region13: #{tpu_custom_call.1} parent=1 // pred_fallthru
      _
    // Predicated region
    $region14: #{tpu_custom_call.1} parent=1 // pred_check
      _
    $region15: #{tpu_custom_call.1} parent=1 // pred_check_branch
      %40 = sbr.rel (0) target = $region17
    $region16: #{tpu_custom_call.1} parent=1 // pred_region
      %s42 = ssub.s32 512, 512
      %43 = vsyncadd [#allocation6], %s42
      %s44 = sshll.u32 [#allocation7], 4
      %s45 = int_to_ptr.vmem [resolvable:$true] %s44
      %50 = dma.hbm_to_vmem [thread:$0]  %s3, 512, %s45, [#allocation6], 128, 128, 8
    $region17: #{tpu_custom_call.1} parent=1 // pred_fallthru
      _
    // Predicated region
    $region18: #{tpu_custom_call.1} parent=1 // pred_check
      _
    $region19: #{tpu_custom_call.1} parent=1 // pred_check_branch
      %52 = sbr.rel (0) target = $region21
    $region20: #{tpu_custom_call.1} parent=1 // pred_region
      _
    $region21: #{tpu_custom_call.1} parent=1 // pred_fallthru
      _
    // Predicated region
    $region22: #{tpu_custom_call.1} parent=1 // pred_check
      _
    $region23: #{tpu_custom_call.1} parent=1 // pred_check_branch
      %54 = sbr.rel (0) target = $region25
    $region24: #{tpu_custom_call.1} parent=1 // pred_region
      %55 = dma.done [#allocation3], 256
    $region25: #{tpu_custom_call.1} parent=1 // pred_fallthru
      _
    // Predicated region
    $region26: #{tpu_custom_call.1} parent=1 // pred_check
      _
    $region27: #{tpu_custom_call.1} parent=1 // pred_check_branch
      %57 = sbr.rel (0) target = $region29
    $region28: #{tpu_custom_call.1} parent=1 // pred_region
      %58 = dma.done [#allocation6], 256
    $region29: #{tpu_custom_call.1} parent=1 // pred_fallthru
      _
    // Predicated region
    $region30: #{tpu_custom_call.1} parent=1 // pred_check
      _
    $region31: #{tpu_custom_call.1} parent=1 // pred_check_branch
      %60 = sbr.rel (0) target = $region33
    $region32: #{tpu_custom_call.1} parent=1 // pred_region
      %61 = dma.done [#allocation6], 512
    $region33: #{tpu_custom_call.1} parent=1 // pred_fallthru
      _
    %v62 = vld [vmem:[#allocation2] sm:$0xff]
    %v63 = vld [vmem:[#allocation2 + $0x8] sm:$0xff]
    %v64 = vld [vmem:[#allocation5] sm:$0xff]
    %v65 = vld [vmem:[#allocation5 + $0x8] sm:$0xff]
    %v66 = vld [vmem:[%s2] sm:$0x1]
    %v68 = vlaneseq
    %v69 = vshrl.u32 %v68, 7
    %v70 = vsub.s32 0, %v69
    %v71 = vrot.slane %v66, %v70
    %vm73 = vcmask 130048
    %v75 = vsel %vm73, %v62, 0
    %v78 = vsel %vm73, %v63, 0
    %80 = vmatprep.subr.mxu0 0.0
    %81 = vmatpush1.msra.mxu0 %v64
    %82 = vmatprep.subr.mxu0 0.0
    %83 = vmatpush1.msra.mxu0 %v65
    %84 = vmatprep.subr.mxu0 0.0
    %85 = vmatpush1.msra.mxu0 0.0
    %86 = vmatprep.subr.mxu0 0.0
    %87 = vmatpush1.msra.mxu0 0.0
    %88 = vmatprep.subr.mxu0 0.0
    %89 = vmatpush1.msra.mxu0 0.0
    %90 = vmatprep.subr.mxu0 0.0
    %91 = vmatpush1.msra.mxu0 0.0
    %92 = vmatprep.subr.mxu0 0.0
    %93 = vmatpush1.msra.mxu0 0.0
    %94 = vmatprep.subr.mxu0 0.0
    %95 = vmatpush1.msra.mxu0 0.0
    %96 = vmatprep.subr.mxu0 0.0
    %97 = vmatpush1.msra.mxu0 0.0
    %98 = vmatprep.subr.mxu0 0.0
    %99 = vmatpush1.msra.mxu0 0.0
    %100 = vmatprep.subr.mxu0 0.0
    %101 = vmatpush1.msra.mxu0 0.0
    %102 = vmatprep.subr.mxu0 0.0
    %103 = vmatpush1.msra.mxu0 0.0
    %104 = vmatprep.subr.mxu0 0.0
    %105 = vmatpush1.msra.mxu0 0.0
    %106 = vmatprep.subr.mxu0 0.0
    %107 = vmatpush1.msra.mxu0 0.0
    %108 = vmatprep.subr.mxu0 0.0
    %109 = vmatpush1.msra.mxu0 0.0
    %110 = vmatprep.subr.mxu0 0.0
    %111 = vmatpush1.msra.mxu0 0.0
    %112 = vmatprep.subr.mxu0 0.0
    %113 = vmatpush1.msra.mxu0 0.0
    %114 = vmatprep.subr.mxu0 0.0
    %115 = vmatpush1.msra.mxu0 0.0
    %116 = vmatprep.subr.mxu0 0.0
    %117 = vmatpush1.msra.mxu0 0.0
    %118 = vmatprep.subr.mxu0 0.0
    %119 = vmatpush1.msra.mxu0 0.0
    %120 = vmatprep.subr.mxu0 0.0
    %121 = vmatpush1.msra.mxu0 0.0
    %122 = vmatprep.subr.mxu0 0.0
    %123 = vmatpush1.msra.mxu0 0.0
    %124 = vmatprep.subr.mxu0 0.0
    %125 = vmatpush1.msra.mxu0 0.0
    %126 = vmatprep.subr.mxu0 0.0
    %127 = vmatpush1.msra.mxu0 0.0
    %128 = vmatprep.subr.mxu0 0.0
    %129 = vmatpush1.msra.mxu0 0.0
    %130 = vmatprep.subr.mxu0 0.0
    %131 = vmatpush1.msra.mxu0 0.0
    %132 = vmatprep.subr.mxu0 0.0
    %133 = vmatpush1.msra.mxu0 0.0
    %134 = vmatprep.subr.mxu0 0.0
    %135 = vmatpush1.msra.mxu0 0.0
    %136 = vmatprep.subr.mxu0 0.0
    %137 = vmatpush1.msra.mxu0 0.0
    %138 = vmatprep.subr.mxu0 0.0
    %139 = vmatpush1.msra.mxu0 0.0
    %140 = vmatprep.subr.mxu0 0.0
    %141 = vmatpush1.msra.mxu0 0.0
    %142 = vmatprep.subr.mxu0 0.0
    %143 = vmatpush1.msra.mxu0 0.0
    %144 = vmatprep.mubr.f32.mxu0 0.0
    %145 = vmatmul.mubr.f32.gmra.mrb[0].mxu0 %v75
    %v146 = vpop.f32.mrb[0].mxu0
    %v147 = vadd.f32 %v71, %v146
    %v148 = vpop.f32.mrb[0].mxu0
    %149 = vmatprep.mubr.f32.mxu0 0.0
    %150 = vmatmul.mubr.f32.gmra.mrb[0].mxu0 %v78
    %v151 = vpop.f32.mrb[0].mxu0
    %v152 = vadd.f32 %v71, %v151
    %v153 = vpop.f32.mrb[0].mxu0
    %154 = vdwg.mxu0
    %v155 = vtanh.pop %v147
    %v156 = vtanh.pop %v152
    %v157 = vld [vmem:[#allocation7] sm:$0xff]
    %v158 = vld [vmem:[#allocation7 + $0x8] sm:$0xff]
    %v159 = vld [vmem:[#allocation7 + $0x10] sm:$0xff]
    %v160 = vld [vmem:[#allocation7 + $0x18] sm:$0xff]
    %v161 = vld [vmem:[%s4] sm:$0x1]
    %v163 = vlaneseq
    %v164 = vshrl.u32 %v163, 7
    %v165 = vsub.s32 0, %v164
    %v166 = vrot.slane %v161, %v165
    %vm168 = vcmask 261120
    %v170 = vsel %vm168, %v155, 0
    %v173 = vsel %vm168, %v156, 0
    %175 = vmatprep.subr.mxu0 0.0
    %176 = vmatpush1.msra.mxu0 %v157
    %177 = vmatprep.subr.mxu0 0.0
    %178 = vmatpush1.msra.mxu0 %v158
    %179 = vmatprep.subr.mxu0 0.0
    %180 = vmatpush1.msra.mxu0 %v159
    %181 = vmatprep.subr.mxu0 0.0
    %182 = vmatpush1.msra.mxu0 %v160
    %183 = vmatprep.subr.mxu0 0.0
    %184 = vmatpush1.msra.mxu0 0.0
    %185 = vmatprep.subr.mxu0 0.0
    %186 = vmatpush1.msra.mxu0 0.0
    %187 = vmatprep.subr.mxu0 0.0
    %188 = vmatpush1.msra.mxu0 0.0
    %189 = vmatprep.subr.mxu0 0.0
    %190 = vmatpush1.msra.mxu0 0.0
    %191 = vmatprep.subr.mxu0 0.0
    %192 = vmatpush1.msra.mxu0 0.0
    %193 = vmatprep.subr.mxu0 0.0
    %194 = vmatpush1.msra.mxu0 0.0
    %195 = vmatprep.subr.mxu0 0.0
    %196 = vmatpush1.msra.mxu0 0.0
    %197 = vmatprep.subr.mxu0 0.0
    %198 = vmatpush1.msra.mxu0 0.0
    %199 = vmatprep.subr.mxu0 0.0
    %200 = vmatpush1.msra.mxu0 0.0
    %201 = vmatprep.subr.mxu0 0.0
    %202 = vmatpush1.msra.mxu0 0.0
    %203 = vmatprep.subr.mxu0 0.0
    %204 = vmatpush1.msra.mxu0 0.0
    %205 = vmatprep.subr.mxu0 0.0
    %206 = vmatpush1.msra.mxu0 0.0
    %207 = vmatprep.subr.mxu0 0.0
    %208 = vmatpush1.msra.mxu0 0.0
    %209 = vmatprep.subr.mxu0 0.0
    %210 = vmatpush1.msra.mxu0 0.0
    %211 = vmatprep.subr.mxu0 0.0
    %212 = vmatpush1.msra.mxu0 0.0
    %213 = vmatprep.subr.mxu0 0.0
    %214 = vmatpush1.msra.mxu0 0.0
    %215 = vmatprep.subr.mxu0 0.0
    %216 = vmatpush1.msra.mxu0 0.0
    %217 = vmatprep.subr.mxu0 0.0
    %218 = vmatpush1.msra.mxu0 0.0
    %219 = vmatprep.subr.mxu0 0.0
    %220 = vmatpush1.msra.mxu0 0.0
    %221 = vmatprep.subr.mxu0 0.0
    %222 = vmatpush1.msra.mxu0 0.0
    %223 = vmatprep.subr.mxu0 0.0
    %224 = vmatpush1.msra.mxu0 0.0
    %225 = vmatprep.subr.mxu0 0.0
    %226 = vmatpush1.msra.mxu0 0.0
    %227 = vmatprep.subr.mxu0 0.0
    %228 = vmatpush1.msra.mxu0 0.0
    %229 = vmatprep.subr.mxu0 0.0
    %230 = vmatpush1.msra.mxu0 0.0
    %231 = vmatprep.subr.mxu0 0.0
    %232 = vmatpush1.msra.mxu0 0.0
    %233 = vmatprep.subr.mxu0 0.0
    %234 = vmatpush1.msra.mxu0 0.0
    %235 = vmatprep.subr.mxu0 0.0
    %236 = vmatpush1.msra.mxu0 0.0
    %237 = vmatprep.subr.mxu0 0.0
    %238 = vmatpush1.msra.mxu0 0.0
    %239 = vmatprep.mubr.f32.mxu0 0.0
    %240 = vmatmul.mubr.f32.gmra.mrb[0].mxu0 %v170
    %v241 = vpop.f32.mrb[0].mxu0
    %v242 = vadd.f32 %v166, %v241
    %v243 = vpop.f32.mrb[0].mxu0
    %244 = vmatprep.mubr.f32.mxu0 0.0
    %245 = vmatmul.mubr.f32.gmra.mrb[0].mxu0 %v173
    %v246 = vpop.f32.mrb[0].mxu0
    %v247 = vadd.f32 %v166, %v246
    %v248 = vpop.f32.mrb[0].mxu0
    %249 = vdwg.mxu0
    %250 = vst.msk [vmem:[#allocation8] sm:$0xff] %vm168, %v242
    %251 = vst.msk [vmem:[#allocation8 + $0x8] sm:$0xff] %vm168, %v247
    // Predicated region
    $region34: #{tpu_custom_call.1} parent=1 // pred_check
      _
    $region35: #{tpu_custom_call.1} parent=1 // pred_check_branch
      %253 = sbr.rel (0) target = $region37
    $region36: #{tpu_custom_call.1} parent=1 // pred_region
      %s255 = ssub.s32 256, 256
      %256 = vsyncadd [#allocation4], %s255
      %s257 = sshll.u32 [#allocation8], 4
      %s258 = int_to_ptr.vmem [resolvable:$true] %s257
      %263 = dma.vmem_to_hbm [thread:$0]  %s258, 256, %s5, [#allocation4], 128, 128, 8
    $region37: #{tpu_custom_call.1} parent=1 // pred_fallthru
      _
    // Predicated region
    $region38: #{tpu_custom_call.1} parent=1 // pred_check
      _
    $region39: #{tpu_custom_call.1} parent=1 // pred_check_branch
      %265 = sbr.rel (0) target = $region41
    $region40: #{tpu_custom_call.1} parent=1 // pred_region
      %266 = dma.done [#allocation4], 256
    $region41: #{tpu_custom_call.1} parent=1 // pred_fallthru
      _
    %267 = vsyncpa [#allocation3], 1
    %268 = vsyncpa [#allocation6], 1
    %269 = vsyncpa [#allocation4], 1

</llo_original>
